<compile_context>
chip_gen: v6e
topology: v6e:2x2x1
jax: 0.10.0
libtpu: 0.0.40
codegen_flags: <defaults>
</compile_context>

<pallas_src>
import functools

import jax
import jax.numpy as jnp
from jax.experimental import pallas as pl
from jax.experimental.pallas import tpu as pltpu

GAMMA_NEG = 4
GAMMA_POS = 1
CLIP = 0.05
EPS = 1e-8

# Padding logit: sigmoid(-100) ~ 0 -> xs_neg = min(1 + clip, 1) = 1, so with a
# padded target of 0 the contribution is log(1) * (1-1)^4 == exactly 0.
_PAD_LOGIT = -100.0

# Double-buffered input working set: 2 inputs x 2 pipeline buffers x tile.
# 8 MiB stays well inside every generation's scoped VMEM limit (v5e 16 MiB
# default, v6e 32 MiB, v7x 32 MiB default / 64 MiB physical).
_VMEM_BUDGET_BYTES = 8 * 1024 * 1024
_MAX_FULL_C = 2048   # keep the whole class dim resident if <= this wide
_TILE_C = 512        # otherwise tile the class axis in 512-lane chunks


def _round_up(x, m):
    return ((x + m - 1) // m) * m


def _asl_kernel(yhat_ref, y_ref, out_ref):
    """One (tile_m, tile_c) tile -> negated partial sum into an (8,128) block.

    Binary-target formulation (y in {0, 1}):
      los_pos + los_neg == log(max(pt, eps)),  pt = where(y, xs_pos, xs_neg)
      (1 - pt)^gamma    == where(y, (1 - pt), ((1 - pt)^2)^2)
    so EUP work per element is just sigmoid + one log (no pow, single log).
    """
    j = pl.program_id(1)  # class-tile axis: reduction, innermost, "arbitrary"

    @pl.when(j == 0)
    def _init():
        out_ref[...] = jnp.zeros_like(out_ref)

    x = yhat_ref[...].astype(jnp.float32)
    t = y_ref[...].astype(jnp.float32)

    xs_pos = jax.nn.sigmoid(x)
    xs_neg = jnp.minimum((1.0 - xs_pos) + CLIP, 1.0)   # asymmetric clipping

    # TODO(synk): assumes binarized targets (t in {0,1}); for soft labels use
    # the original two-log + jnp.power formulation instead.
    is_pos = t > 0.0
    pt = jnp.where(is_pos, xs_pos, xs_neg)             # xs_pos*t + xs_neg*(1-t)
    log_pt = jnp.log(jnp.maximum(pt, EPS))             # fused los_pos + los_neg

    one_m_pt = 1.0 - pt
    sq = one_m_pt * one_m_pt
    w = jnp.where(is_pos, one_m_pt, sq * sq)           # (1-pt)^1 vs (1-pt)^4

    partial = -jnp.sum(log_pt * w)                     # negated tile sum

    # Place the scalar partial at [0, 0] of this row-tile's private (8, 128)
    # output block (lane-dense, unmasked store); zeros elsewhere so the
    # wrapper's jnp.sum over all partial blocks is exact.
    r = jax.lax.broadcasted_iota(jnp.int32, (8, 128), 0)
    c = jax.lax.broadcasted_iota(jnp.int32, (8, 128), 1)
    out_ref[...] += jnp.where((r == 0) & (c == 0), partial, 0.0)


@functools.partial(jax.jit, static_argnames=("max_tile_rows",))
def asymmetric_loss_multilabel(y_hat, y, *, max_tile_rows=1024):
    """JAX/Pallas equivalent of AsymmetricLossMultiLabel.forward.

    y_hat: (N, C) logits; y: (N, C) binarized multi-label targets.
    Returns scalar float32 loss = -sum(weighted log-likelihood).
    """
    n, c = y_hat.shape
    max_tile_rows = max(8, (int(max_tile_rows) // 8) * 8)

    # ---- class-axis tiling --------------------------------------------------
    if c <= _MAX_FULL_C:
        tile_c, c_padded = c, c            # full dim block (any width is legal)
    else:
        tile_c = _TILE_C                   # multiple of 128
        c_padded = _round_up(c, tile_c)

    # ---- row-axis tiling from the VMEM budget -------------------------------
    itemsize = max(jnp.dtype(y_hat.dtype).itemsize, jnp.dtype(y.dtype).itemsize)
    per_buffer = _VMEM_BUDGET_BYTES // 4   # 2 inputs x double-buffered
    tile_m = per_buffer // max(tile_c * itemsize, 1)
    tile_m = (tile_m // 8) * 8
    tile_m = max(8, min(max_tile_rows, tile_m))
    tile_m = min(tile_m, _round_up(n, 8))
    n_padded = _round_up(n, tile_m)

    # ---- pad so every tile is full; padded elements contribute exactly 0 ----
    pad_n, pad_c = n_padded - n, c_padded - c
    if pad_n or pad_c:
        y_hat = jnp.pad(y_hat, ((0, pad_n), (0, pad_c)),
                        constant_values=_PAD_LOGIT)
        y = jnp.pad(y, ((0, pad_n), (0, pad_c)), constant_values=0)

    grid_m = n_padded // tile_m
    grid_c = c_padded // tile_c
    grid = (grid_m, grid_c)

    partials = pl.pallas_call(
        _asl_kernel,
        out_shape=jax.ShapeDtypeStruct((8, grid_m * 128), jnp.float32),
        grid_spec=pltpu.PrefetchScalarGridSpec(
            num_scalar_prefetch=0,
            grid=grid,
            in_specs=[
                pl.BlockSpec((tile_m, tile_c), lambda i, j: (i, j)),
                pl.BlockSpec((tile_m, tile_c), lambda i, j: (i, j)),
            ],
            # Each row-tile i owns its own (8, 128) output block -> the row
            # axis is truly parallel (v7x 2-TC sharding); the class-tile axis
            # accumulates into that resident block ("arbitrary").
            out_specs=pl.BlockSpec((8, 128), lambda i, j: (0, i)),
        ),
        compiler_params=pltpu.CompilerParams(
            dimension_semantics=("parallel", "arbitrary"),
        ),
    )(y_hat, y)

    return jnp.sum(partials)


def _reference(y_hat, y):
    """Pure-JAX reference mirroring the PyTorch forward exactly."""
    x = y_hat.astype(jnp.float32)
    t = y.astype(jnp.float32)
    sig = jax.nn.sigmoid(x)
    xs_pos = sig
    xs_neg = jnp.minimum(1.0 - sig + CLIP, 1.0)
    los_pos = t * jnp.log(jnp.maximum(xs_pos, EPS))
    los_neg = (1.0 - t) * jnp.log(jnp.maximum(xs_neg, EPS))
    loss = los_pos + los_neg
    pt = xs_pos * t + xs_neg * (1.0 - t)
    gamma = GAMMA_POS * t + GAMMA_NEG * (1.0 - t)
    loss = loss * jnp.power(1.0 - pt, gamma)
    return -jnp.sum(loss)


if __name__ == "__main__":
    key = jax.random.PRNGKey(0)

    # Case 1: simple aligned shape, single tile.
    k1, k2, key = jax.random.split(key, 3)
    yh1 = jax.random.normal(k1, (16, 128), dtype=jnp.float32)
    yt1 = (jax.random.uniform(k2, (16, 128)) > 0.5).astype(jnp.float32)
    out1 = jax.block_until_ready(asymmetric_loss_multilabel(yh1, yt1))
    ref1 = jax.block_until_ready(_reference(yh1, yt1))
    assert jnp.allclose(out1, ref1, rtol=1e-5, atol=1e-3), (out1, ref1)

    # Case 2: ragged batch + non-128 class width + multiple row tiles
    # (exercises padding and the parallel per-tile partial outputs).
    k1, k2, key = jax.random.split(key, 3)
    yh2 = jax.random.normal(k1, (20, 96), dtype=jnp.float32)
    yt2 = (jax.random.uniform(k2, (20, 96)) > 0.5).astype(jnp.float32)
    out2 = jax.block_until_ready(
        asymmetric_loss_multilabel(yh2, yt2, max_tile_rows=8))
    ref2 = jax.block_until_ready(_reference(yh2, yt2))
    assert jnp.allclose(out2, ref2, rtol=1e-5, atol=1e-3), (out2, ref2)

    # Case 3: wide class dim -> class-axis tiling + accumulation over j.
    k1, k2, key = jax.random.split(key, 3)
    yh3 = jax.random.normal(k1, (8, 2560), dtype=jnp.float32)
    yt3 = (jax.random.uniform(k2, (8, 2560)) > 0.5).astype(jnp.float32)
    out3 = jax.block_until_ready(asymmetric_loss_multilabel(yh3, yt3))
    ref3 = jax.block_until_ready(_reference(yh3, yt3))
    assert jnp.allclose(out3, ref3, rtol=1e-5, atol=1e-3), (out3, ref3)

    print("KERNEL_OK")
</pallas_src>

<mosaic_0001>
module attributes {stable_mosaic.version = 11 : i64} {
  func.func @_asl_kernel(%arg0: i32, %arg1: i32, %arg2: memref<16x128xf32, #tpu.memory_space<vmem>>, %arg3: memref<16x128xf32, #tpu.memory_space<vmem>>, %arg4: memref<8x128xf32, #tpu.memory_space<vmem>>) attributes {dimension_semantics = [#tpu.dimension_semantics<parallel>, #tpu.dimension_semantics<arbitrary>], iteration_bounds = array<i64: 1, 1>, scalar_prefetch = 0 : i64, scratch_operands = 0 : i64, tpu.core_type = #tpu.core_type<tc>, window_params = [{transform_indices = @transform_0, window_bounds = array<i64: 16, 128>}, {transform_indices = @transform_1, window_bounds = array<i64: 16, 128>}, {transform_indices = @transform_2, window_bounds = array<i64: 8, 128>}]} {
    %c0_i32 = arith.constant 0 : i32
    %0 = arith.cmpi eq, %arg1, %c0_i32 : i32
    %1 = arith.extui %0 : i1 to i32
    %c0_i32_0 = arith.constant 0 : i32
    %2 = arith.cmpi ne, %1, %c0_i32_0 : i32
    scf.if %2 {
      %cst_19 = arith.constant 0.000000e+00 : f32
      %46 = vector.broadcast %cst_19 : f32 to vector<8x128xf32>
      %c0_20 = arith.constant 0 : index
      %c0_21 = arith.constant 0 : index
      %47 = vector.load %arg4[%c0_20, %c0_21] : memref<8x128xf32, #tpu.memory_space<vmem>>, vector<8x128xf32>
      tpu.vector_store %arg4[%c0_20, %c0_21], %46 {strides = array<i32>} : memref<8x128xf32, #tpu.memory_space<vmem>>, vector<8x128xf32>,
    } else {
    }
    %c0 = arith.constant 0 : index
    %c0_1 = arith.constant 0 : index
    %3 = vector.load %arg2[%c0, %c0_1] : memref<16x128xf32, #tpu.memory_space<vmem>>, vector<16x128xf32>
    %c0_2 = arith.constant 0 : index
    %c0_3 = arith.constant 0 : index
    %4 = vector.load %arg3[%c0_2, %c0_3] : memref<16x128xf32, #tpu.memory_space<vmem>>, vector<16x128xf32>
    %5 = arith.negf %3 : vector<16x128xf32>
    %6 = math.exp %5 : vector<16x128xf32>
    %cst = arith.constant 1.000000e+00 : f32
    %7 = vector.broadcast %cst : f32 to vector<16x128xf32>
    %8 = arith.addf %7, %6 : vector<16x128xf32>
    %9 = arith.divf %7, %8 : vector<16x128xf32>
    %cst_4 = arith.constant 1.000000e+00 : f32
    %10 = vector.broadcast %cst_4 : f32 to vector<16x128xf32>
    %11 = arith.subf %10, %9 : vector<16x128xf32>
    %cst_5 = arith.constant 5.000000e-02 : f32
    %12 = vector.broadcast %cst_5 : f32 to vector<16x128xf32>
    %13 = arith.addf %11, %12 : vector<16x128xf32>
    %cst_6 = arith.constant 1.000000e+00 : f32
    %14 = vector.broadcast %cst_6 : f32 to vector<16x128xf32>
    %15 = arith.minimumf %13, %14 : vector<16x128xf32>
    %cst_7 = arith.constant 0.000000e+00 : f32
    %16 = vector.broadcast %cst_7 : f32 to vector<16x128xf32>
    %17 = arith.cmpf ogt, %4, %16 : vector<16x128xf32>
    %18 = arith.select %17, %9, %15 : vector<16x128xi1>, vector<16x128xf32>
    %cst_8 = arith.constant 9.99999993E-9 : f32
    %19 = vector.broadcast %cst_8 : f32 to vector<16x128xf32>
    %20 = arith.maximumf %18, %19 : vector<16x128xf32>
    %21 = math.log %20 : vector<16x128xf32>
    %cst_9 = arith.constant 1.000000e+00 : f32
    %22 = vector.broadcast %cst_9 : f32 to vector<16x128xf32>
    %23 = arith.subf %22, %18 : vector<16x128xf32>
    %24 = arith.mulf %23, %23 : vector<16x128xf32>
    %25 = arith.mulf %24, %24 : vector<16x128xf32>
    %26 = arith.select %17, %23, %25 : vector<16x128xi1>, vector<16x128xf32>
    %27 = arith.mulf %21, %26 : vector<16x128xf32>
    %28 = vector.shape_cast %27 : vector<16x128xf32> to vector<1x16x128xf32>
    %cst_10 = arith.constant dense<0.000000e+00> : vector<1xf32>
    %29 = vector.multi_reduction <add>, %28, %cst_10 [1, 2] : vector<1x16x128xf32> to vector<1xf32>
    %30 = vector.shape_cast %29 : vector<1xf32> to vector<1x1x1xf32>
    %31 = vector.extract %30[0, 0, 0] : f32 from vector<1x1x1xf32>
    %cst_11 = arith.constant 0.000000e+00 : f32
    %32 = arith.subf %cst_11, %31 : f32
    %33 = tpu.iota {dimensions = array<i32: 0>} : vector<8x128xi32>
    %34 = tpu.iota {dimensions = array<i32: 1>} : vector<8x128xi32>
    %c0_12 = arith.constant 0 : index
    %c0_13 = arith.constant 0 : index
    %35 = vector.load %arg4[%c0_12, %c0_13] : memref<8x128xf32, #tpu.memory_space<vmem>>, vector<8x128xf32>
    %c0_i32_14 = arith.constant 0 : i32
    %36 = vector.broadcast %c0_i32_14 : i32 to vector<8x128xi32>
    %37 = arith.cmpi eq, %33, %36 : vector<8x128xi32>
    %c0_i32_15 = arith.constant 0 : i32
    %38 = vector.broadcast %c0_i32_15 : i32 to vector<8x128xi32>
    %39 = arith.cmpi eq, %34, %38 : vector<8x128xi32>
    %40 = arith.andi %37, %39 : vector<8x128xi1>
    %cst_16 = arith.constant 0.000000e+00 : f32
    %41 = vector.broadcast %32 : f32 to vector<8x128xf32>
    %42 = vector.broadcast %cst_16 : f32 to vector<8x128xf32>
    %43 = arith.select %40, %41, %42 : vector<8x128xi1>, vector<8x128xf32>
    %44 = arith.addf %35, %43 : vector<8x128xf32>
    %c0_17 = arith.constant 0 : index
    %c0_18 = arith.constant 0 : index
    %45 = vector.load %arg4[%c0_17, %c0_18] : memref<8x128xf32, #tpu.memory_space<vmem>>, vector<8x128xf32>
    tpu.vector_store %arg4[%c0_17, %c0_18], %44 {strides = array<i32>} : memref<8x128xf32, #tpu.memory_space<vmem>>, vector<8x128xf32>,
    return
  }
  func.func @transform_0(%arg0: i32, %arg1: i32) -> (i32, i32) {
    %c0_i32 = arith.constant 0 : i32
    return %arg0, %arg1 : i32, i32
  }
  func.func @transform_1(%arg0: i32, %arg1: i32) -> (i32, i32) {
    %c0_i32 = arith.constant 0 : i32
    return %arg0, %arg1 : i32, i32
  }
  func.func @transform_2(%arg0: i32, %arg1: i32) -> (i32, i32) {
    %c0_i32 = arith.constant 0 : i32
    %c0_i32_0 = arith.constant 0 : i32
    return %c0_i32, %arg0 : i32, i32
  }
}

</mosaic_0001>

<llo_original>
// kernel: asymmetric_loss_multilabel.1
$region0: #{asymmetric_loss_multilabel.1}
  #allocation0 [shape = 'u32[]', space=smem, size = 0x4, offset = 0x4, fixed_abs, tag = 'smem constant byte address 0x4 - core index']
  #allocation1 [shape = 'u32[144,128]{1,0:T(1,128)}', space=vmem, size = 0x12000, scoped, tag = 'internal scratch']
  %s0 = inlined_call_operand.hbm [shape: f32[16,128], index: 0, kind: input, shape index: {}]
  %s1 = inlined_call_operand.hbm [shape: f32[16,128], index: 1, kind: input, shape index: {}]
  %s2 = inlined_call_operand.vmem [shape: f32[8,128], index: 2, kind: output, shape index: {}]
  %s3 = sld [smem:[#allocation0]]
  $region30: #{asymmetric_loss_multilabel.1} parent=0
    _
  %s5 = ssub.s32 1, %s3
  %s6 = scalar_select 0, %s5, %s3
  $region1: #{asymmetric_loss_multilabel.1} parent=0
    #allocation2 [shape = 'u8[8192]{0}', space=vmem, size = 0x2000, scoped, tag = 'input window, operand 0, single buffered']
    #allocation3 [shape = 's32[1]{0}', space=sflag, size = 0x4, scoped, tag = 'scoped memory for asymmetric_loss_multilabel.1']
    #allocation4 [shape = 'u8[8192]{0}', space=vmem, size = 0x2000, scoped, tag = 'input window, operand 1, single buffered']
    #allocation5 [shape = 's32[1]{0}', space=sflag, size = 0x4, scoped, tag = 'scoped memory for asymmetric_loss_multilabel.1']
    %7 = vsyncpa [#allocation3], 0
    %8 = vsyncpa [#allocation5], 0
    // Predicated region
    $region2: #{asymmetric_loss_multilabel.1} parent=1 // pred_check
      _
    $region3: #{asymmetric_loss_multilabel.1} parent=1 // pred_check_branch
      %10 = sbr.rel (0) target = $region5
    $region4: #{asymmetric_loss_multilabel.1} parent=1 // pred_region
      %s12 = ssub.s32 256, 256
      %13 = vsyncadd [#allocation3], %s12
      %s14 = sshll.u32 [#allocation2], 4
      %s15 = int_to_ptr.vmem [resolvable:$true] %s14
      %20 = dma.hbm_to_vmem [thread:$0]  %s0, 256, %s15, [#allocation3], 128, 128, 8
    $region5: #{asymmetric_loss_multilabel.1} parent=1 // pred_fallthru
      _
    // Predicated region
    $region6: #{asymmetric_loss_multilabel.1} parent=1 // pred_check
      _
    $region7: #{asymmetric_loss_multilabel.1} parent=1 // pred_check_branch
      %22 = sbr.rel (0) target = $region9
    $region8: #{asymmetric_loss_multilabel.1} parent=1 // pred_region
      %s24 = ssub.s32 256, 256
      %25 = vsyncadd [#allocation5], %s24
      %s26 = sshll.u32 [#allocation4], 4
      %s27 = int_to_ptr.vmem [resolvable:$true] %s26
      %32 = dma.hbm_to_vmem [thread:$0]  %s1, 256, %s27, [#allocation5], 128, 128, 8
    $region9: #{asymmetric_loss_multilabel.1} parent=1 // pred_fallthru
      _
    // Predicated region
    $region10: #{asymmetric_loss_multilabel.1} parent=1 // pred_check
      _
    $region11: #{asymmetric_loss_multilabel.1} parent=1 // pred_check_branch
      %34 = sbr.rel (0) target = $region13
    $region12: #{asymmetric_loss_multilabel.1} parent=1 // pred_region
      %35 = dma.done [#allocation3], 256
    $region13: #{asymmetric_loss_multilabel.1} parent=1 // pred_fallthru
      _
    // Predicated region
    $region14: #{asymmetric_loss_multilabel.1} parent=1 // pred_check
      _
    $region15: #{asymmetric_loss_multilabel.1} parent=1 // pred_check_branch
      %37 = sbr.rel (0) target = $region17
    $region16: #{asymmetric_loss_multilabel.1} parent=1 // pred_region
      %38 = dma.done [#allocation5], 256
    $region17: #{asymmetric_loss_multilabel.1} parent=1 // pred_fallthru
      _
    %p39 = scmp.eq.s32.totalorder 0, 0
    // Predicated region
    $region18: #{asymmetric_loss_multilabel.1} parent=1 // pred_check
      %p40 = pneg %p39
    $region19: #{asymmetric_loss_multilabel.1} parent=1 // pred_check_branch
      %42 = sbr.rel (%p40) target = $region21
    $region20: #{asymmetric_loss_multilabel.1} parent=1 // pred_region
      %43 = vst [vmem:[%s2] sm:$0xff] 0.0
    $region21: #{asymmetric_loss_multilabel.1} parent=1 // pred_fallthru
      _
    %v44 = vld [vmem:[#allocation2] sm:$0xff]
    %v45 = vld [vmem:[#allocation2 + $0x8] sm:$0xff]
    %v46 = vld [vmem:[#allocation4] sm:$0xff]
    %v47 = vld [vmem:[#allocation4 + $0x8] sm:$0xff]
    %v48 = vxor.u32 %v44, 2147483648
    %v49 = vxor.u32 %v45, 2147483648
    %v50 = vmul.f32 %v48, 1.442695
    %v51 = vpow.pop %v50
    %v52 = vmul.f32 %v49, 1.442695
    %v53 = vpow.pop %v52
    %v54 = vadd.f32 %v51, 1.0
    %v55 = vadd.f32 %v53, 1.0
    %v56 = vrcp.pop %v54
    %v57 = vmul.f32 1.0, %v56
    %v58 = vrcp.pop %v55
    %v59 = vmul.f32 1.0, %v58
    %v60 = vsub.f32 1.0, %v57
    %v61 = vsub.f32 1.0, %v59
    %v62 = vadd.f32 %v60, 0.05
    %v63 = vadd.f32 %v61, 0.05
    %v64 = vmin.f32 %v62, 1.0
    %v65 = vmin.f32 %v63, 1.0
    %vm66 = vcmp.gt.f32.partialorder %v46, 0.0
    %vm67 = vcmp.gt.f32.partialorder %v47, 0.0
    %v68 = vsel %vm66, %v57, %v64
    %v69 = vsel %vm67, %v59, %v65
    %v70 = vmax.f32 %v68, 1e-08
    %v71 = vmax.f32 %v69, 1e-08
    %v72 = vlog2.pop %v70
    %v73 = vmul.f32 %v72, 0.6931472
    %v74 = vlog2.pop %v71
    %v75 = vmul.f32 %v74, 0.6931472
    %v76 = vsub.f32 1.0, %v68
    %v77 = vsub.f32 1.0, %v69
    %v78 = vmul.f32 %v76, %v76
    %v79 = vmul.f32 %v77, %v77
    %v80 = vmul.f32 %v78, %v78
    %v81 = vmul.f32 %v79, %v79
    %v82 = vsel %vm66, %v76, %v80
    %v83 = vsel %vm67, %v77, %v81
    %v84 = vmul.f32 %v73, %v82
    %v85 = vmul.f32 %v75, %v83
    %v86 = vadd.f32 %v84, %v85
    %87 = vadd.xlane.f32.xlu0 %v86
    %v88 = vpop.xlane.xlu0 %87
    %v89 = vrot.slane %v88, 4
    %v90 = vadd.f32 %v88, %v89
    %v91 = vrot.slane %v90, 2
    %v92 = vadd.f32 %v90, %v91
    %v93 = vrot.slane %v92, 1
    %v94 = vadd.f32 %v92, %v93
    %s95 = vtos %v94
    %s96 = ssub.f32 0.0, %s95
    %v97 = vlaneseq
    %v98 = vshrl.u32 %v97, 7
    %v99 = vlaneseq
    %v100 = vand.u32 %v99, 127
    %v101 = vld [vmem:[%s2] sm:$0xff]
    %vm102 = vcmp.eq.s32.totalorder %v98, 0
    %vm103 = vcmp.eq.s32.totalorder %v100, 0
    %vm104 = vmand %vm102, %vm103
    %v105 = vstv %s96
    %v106 = vsel %vm104, %v105, 0.0
    %v107 = vadd.f32 %v101, %v106
    %108 = vst [vmem:[%s2] sm:$0xff] %v107
    // Predicated region
    $region22: #{asymmetric_loss_multilabel.1} parent=1 // pred_check
      _
    $region23: #{asymmetric_loss_multilabel.1} parent=1 // pred_check_branch
      %110 = sbr.rel (0) target = $region25
    $region24: #{asymmetric_loss_multilabel.1} parent=1 // pred_region
      _
    $region25: #{asymmetric_loss_multilabel.1} parent=1 // pred_fallthru
      _
    // Predicated region
    $region26: #{asymmetric_loss_multilabel.1} parent=1 // pred_check
      _
    $region27: #{asymmetric_loss_multilabel.1} parent=1 // pred_check_branch
      %112 = sbr.rel (0) target = $region29
    $region28: #{asymmetric_loss_multilabel.1} parent=1 // pred_region
      _
    $region29: #{asymmetric_loss_multilabel.1} parent=1 // pred_fallthru
      _
    %113 = vsyncpa [#allocation3], 1
    %114 = vsyncpa [#allocation5], 1

</llo_original>
